<compile_context>
chip_gen: v7x
topology: tpu7x:2x2x1
jax: 0.10.0
libtpu: 0.0.40
codegen_flags: <defaults>
</compile_context>

<pallas_src>
import jax
import jax.numpy as jnp
from jax.experimental import pallas as pl
from jax.experimental.pallas import tpu as pltpu


# --------------------------------------------------------------------------- #
# Kernels (channel-first: point dim T lives in lanes)
# --------------------------------------------------------------------------- #
def _att_kernel(img_ref, pts_ref, s1_ref, t1_ref, w1_ref, w2_ref, b12_ref,
                w3_ref, b3_ref, att_ref):
    """attT tile: sigmoid(fc3(tanh(fc1(img) + fc2(pts))))^T -> (pc, T)."""
    # fc1 = BatchNorm1d(ic) -> ReLU -> Linear(ic, rc); BN folded into s1/t1.
    x = img_ref[...].astype(jnp.float32)                        # (ic, T)
    h = jnp.maximum(x * s1_ref[...] + t1_ref[...], 0.0)         # (ic, T) f32

    # fc1(img) + fc2(pts) in transposed form: weights on the left, T in lanes.
    # pts/w2 stay in the I/O dtype (bf16 goes straight to the MXU, f32 acc).
    pre = (jnp.dot(w1_ref[...], h, preferred_element_type=jnp.float32)
           + jnp.dot(w2_ref[...], pts_ref[...],
                     preferred_element_type=jnp.float32)
           + b12_ref[...])                                       # (rc, T)

    z = jnp.tanh(pre)                                            # EUP, f32
    logits = (jnp.dot(w3_ref[...], z, preferred_element_type=jnp.float32)
              + b3_ref[...])                                     # (pc, T)
    att_ref[...] = jax.nn.sigmoid(logits).astype(att_ref.dtype)  # lane-dense


def _fuse_kernel(img_ref, attv_ref, wcs_ref, bf_ref, out_ref):
    """out tile: relu(BN(conv1(img))) * att_view, lane-dense (pc, T)."""
    # 1x1 Conv1d == matmul; BN scale folded into wcs, bias+shift into bf.
    y = jnp.dot(wcs_ref[...], img_ref[...],
                preferred_element_type=jnp.float32)              # (pc, T)
    y = jnp.maximum(y + bf_ref[...], 0.0)
    out_ref[...] = (y * attv_ref[...].astype(jnp.float32)).astype(out_ref.dtype)


# --------------------------------------------------------------------------- #
# Wrapper
# --------------------------------------------------------------------------- #
def li_fusion_forward(img_feats, point_feats, params, *, return_att=False,
                      tile_n=None, io_dtype=jnp.bfloat16, att_dtype=None,
                      channels_first=False):
    """img_feats: (N, ic), point_feats: (N, pc)   (module interface), or
    (ic, N)/(pc, N) if channels_first=True (skips the wrapper transpose when the
    producer is already channel-first, as in the surrounding (B, C, N) network).
    Returns out (1, pc, N) [, att (1, pc, N)], matching LI_Fusion_Layer.forward.
    """
    pc = params["wc"].shape[0]
    rc = params["w1"].shape[0]
    eps = 1e-5
    f32 = jnp.float32
    if att_dtype is None:
        # review note: bf16 is plenty for a sigmoid gate; follows io_dtype here
        # so the f32 path stays bit-faithful to the reference.
        att_dtype = io_dtype

    if channels_first:
        ic, N = img_feats.shape
        imgT = img_feats.astype(io_dtype)                         # (ic, N)
        ptsT = point_feats.astype(io_dtype)                       # (pc, N)
    else:
        N, ic = img_feats.shape
        imgT = img_feats.T.astype(io_dtype)                       # (ic, N)
        ptsT = point_feats.T.astype(io_dtype)                     # (pc, N)

    # ---- tile over the point dimension (lanes) ------------------------------
    if tile_n is None:
        tile_n = 2048                       # 512 is the roofline floor
    tile_n = max(1, min(tile_n, N))
    if tile_n < N and tile_n % 128 != 0:    # lane dim must be 128-aligned
        tile_n = max(128, (tile_n // 128) * 128)
    if tile_n == N and N >= 256:            # v7x megacore: keep >= 2 grid steps
        tile_n = max(128, ((N // 2) // 128) * 128)
    num_tiles = pl.cdiv(N, tile_n)

    # ---- fold BatchNorms / biases (plain-JAX glue on tiny vectors) ----------
    s1v = params["bn1_gamma"] / jnp.sqrt(params["bn1_var"] + eps)
    t1v = params["bn1_beta"] - params["bn1_mean"] * s1v
    scv = params["bnc_gamma"] / jnp.sqrt(params["bnc_var"] + eps)
    tcv = params["bnc_beta"] - params["bnc_mean"] * scv

    s1 = s1v.astype(f32).reshape(ic, 1)
    t1 = t1v.astype(f32).reshape(ic, 1)
    w1 = params["w1"].astype(f32)                                 # (rc, ic)
    w2 = params["w2"].astype(io_dtype)                            # (rc, pc)
    b12 = (params["b1"] + params["b2"]).astype(f32).reshape(rc, 1)
    w3 = params["w3"].astype(f32)                                 # (pc, rc)
    b3 = params["b3"].astype(f32).reshape(pc, 1)
    wcs = (params["wc"] * scv[:, None]).astype(io_dtype)          # (pc, ic)
    bf = (params["bc"] * scv + tcv).astype(f32).reshape(pc, 1)

    cparams = pltpu.CompilerParams(
        dimension_semantics=("parallel",),
        vmem_limit_bytes=32 * 1024 * 1024,   # safe on v7x (64 MiB/TC physical)
    )
    const = lambda i: (0, 0)                 # resident params, fetched once

    # ---- kernel A: transposed attention, lane-dense (pc, N) -----------------
    attT = pl.pallas_call(
        _att_kernel,
        grid=(num_tiles,),
        in_specs=[
            pl.BlockSpec((ic, tile_n), lambda i: (0, i)),   # img tile
            pl.BlockSpec((pc, tile_n), lambda i: (0, i)),   # pts tile
            pl.BlockSpec((ic, 1), const),                   # BN1 scale
            pl.BlockSpec((ic, 1), const),                   # BN1 shift
            pl.BlockSpec((rc, ic), const),                  # fc1 weight
            pl.BlockSpec((rc, pc), const),                  # fc2 weight
            pl.BlockSpec((rc, 1), const),                   # b1 + b2
            pl.BlockSpec((pc, rc), const),                  # fc3 weight
            pl.BlockSpec((pc, 1), const),                   # fc3 bias
        ],
        out_specs=pl.BlockSpec((pc, tile_n), lambda i: (0, i)),
        out_shape=jax.ShapeDtypeStruct((pc, N), att_dtype),
        compiler_params=cparams,
    )(imgT, ptsT, s1, t1, w1, w2, b12, w3, b3)

    # PyTorch: att.unsqueeze(1).view(1, pc, -1) is a *flat* reshape of the
    # (N, pc) attention.  attT.T is the logical (N, pc) att; its row-major
    # flatten to (pc, N) is the view multiplied into the conv output.  This
    # single relayout runs on the small, unpadded pc*N buffer.
    att2d = attT.T.reshape(pc, N)

    # ---- kernel B: relu(BN(conv1(img))) * att_view, lane-dense (pc, N) ------
    # Note: for configs with ic >> pc one would compute y inside kernel A and
    # stream y instead of re-reading img here; with ic < pc (this layer's
    # configs) re-reading img is the cheaper stream.
    out2d = pl.pallas_call(
        _fuse_kernel,
        grid=(num_tiles,),
        in_specs=[
            pl.BlockSpec((ic, tile_n), lambda i: (0, i)),   # img tile
            pl.BlockSpec((pc, tile_n), lambda i: (0, i)),   # att-view tile
            pl.BlockSpec((pc, ic), const),                  # conv weight (BN-scaled)
            pl.BlockSpec((pc, 1), const),                   # conv bias + BN shift
        ],
        out_specs=pl.BlockSpec((pc, tile_n), lambda i: (0, i)),
        out_shape=jax.ShapeDtypeStruct((pc, N), io_dtype),
        compiler_params=cparams,
    )(imgT, att2d, wcs, bf)

    out = out2d[None]                        # (1, pc, N)
    if return_att:
        return out, att2d[None]
    return out


# --------------------------------------------------------------------------- #
# Parameters + pure-JAX reference
# --------------------------------------------------------------------------- #
def init_params(key, ic, pc):
    rc = pc // 4
    ks = jax.random.split(key, 16)

    def lin(kw, kb, out_f, in_f):
        bound = 1.0 / jnp.sqrt(jnp.float32(in_f))
        w = jax.random.uniform(kw, (out_f, in_f), jnp.float32, -bound, bound)
        b = jax.random.uniform(kb, (out_f,), jnp.float32, -bound, bound)
        return w, b

    w1, b1 = lin(ks[0], ks[1], rc, ic)       # fc1 Linear(ic, rc)
    w2, b2 = lin(ks[2], ks[3], rc, pc)       # fc2 Linear(pc, rc)
    w3, b3 = lin(ks[4], ks[5], pc, rc)       # fc3 Linear(rc, pc)
    wc, bc = lin(ks[6], ks[7], pc, ic)       # conv1 (1x1 Conv1d)

    return dict(
        w1=w1, b1=b1, w2=w2, b2=b2, w3=w3, b3=b3, wc=wc, bc=bc,
        bn1_gamma=jax.random.uniform(ks[8], (ic,), jnp.float32, 0.5, 1.5),
        bn1_beta=jax.random.uniform(ks[9], (ic,), jnp.float32, -0.5, 0.5),
        bn1_mean=jax.random.uniform(ks[10], (ic,), jnp.float32, -0.5, 0.5),
        bn1_var=jax.random.uniform(ks[11], (ic,), jnp.float32, 0.5, 1.5),
        bnc_gamma=jax.random.uniform(ks[12], (pc,), jnp.float32, 0.5, 1.5),
        bnc_beta=jax.random.uniform(ks[13], (pc,), jnp.float32, -0.5, 0.5),
        bnc_mean=jax.random.uniform(ks[14], (pc,), jnp.float32, -0.5, 0.5),
        bnc_var=jax.random.uniform(ks[15], (pc,), jnp.float32, 0.5, 1.5),
    )


def li_fusion_reference(img, pts, params):
    """Pure-JAX reference mirroring the PyTorch forward (inference-mode BN)."""
    eps = 1e-5
    pc = params["wc"].shape[0]
    N = img.shape[0]
    h = (img - params["bn1_mean"]) / jnp.sqrt(params["bn1_var"] + eps)
    h = h * params["bn1_gamma"] + params["bn1_beta"]
    h = jnp.maximum(h, 0.0)
    ri = h @ params["w1"].T + params["b1"]
    rp = pts @ params["w2"].T + params["b2"]
    att = jax.nn.sigmoid(jnp.tanh(ri + rp) @ params["w3"].T + params["b3"])  # (N, pc)
    y = img @ params["wc"].T + params["bc"]
    y = (y - params["bnc_mean"]) / jnp.sqrt(params["bnc_var"] + eps)
    y = y * params["bnc_gamma"] + params["bnc_beta"]
    y = jnp.maximum(y, 0.0)                                                  # (N, pc)
    att_v = att.reshape(1, pc, N)     # == att.unsqueeze(1).view(1, pc, -1)
    out = y.T[None] * att_v           # (1, pc, N)
    return out, att_v


# --------------------------------------------------------------------------- #
if __name__ == "__main__":
    N, IC, PC = 512, 16, 32           # channels = [ic, pc]; rc = pc // 4 = 8

    key = jax.random.PRNGKey(0)
    k_img, k_pts, k_par = jax.random.split(key, 3)
    img_feats = jax.random.normal(k_img, (N, IC), jnp.float32)
    point_feats = jax.random.normal(k_pts, (N, PC), jnp.float32)
    params = init_params(k_par, IC, PC)

    # ---- f32 I/O path: tight check against the pure-JAX reference ----------
    out, att = li_fusion_forward(img_feats, point_feats, params,
                                 return_att=True, io_dtype=jnp.float32)
    out = jax.block_until_ready(out)
    att = jax.block_until_ready(att)
    out_ref, att_ref = li_fusion_reference(img_feats, point_feats, params)
    assert out.shape == (1, PC, N) and att.shape == (1, PC, N)
    assert jnp.allclose(out, out_ref, rtol=1e-4, atol=1e-4)
    assert jnp.allclose(att, att_ref, rtol=1e-4, atol=1e-4)

    # ---- ragged N (exercises partial last grid step / masked tail) ---------
    N2 = 320
    out2 = li_fusion_forward(img_feats[:N2], point_feats[:N2], params,
                             io_dtype=jnp.float32)
    out2 = jax.block_until_ready(out2)
    out2_ref, _ = li_fusion_reference(img_feats[:N2], point_feats[:N2], params)
    assert out2.shape == (1, PC, N2)
    assert jnp.allclose(out2, out2_ref, rtol=1e-4, atol=1e-4)

    # ---- default bf16 I/O path (production default: bf16 HBM + MXU, f32 acc)
    out_bf = li_fusion_forward(img_feats, point_feats, params)
    out_bf = jax.block_until_ready(out_bf)
    img_r = img_feats.astype(jnp.bfloat16).astype(jnp.float32)
    pts_r = point_feats.astype(jnp.bfloat16).astype(jnp.float32)
    out_ref_bf, _ = li_fusion_reference(img_r, pts_r, params)
    assert out_bf.shape == (1, PC, N)
    assert jnp.allclose(out_bf.astype(jnp.float32), out_ref_bf,
                        rtol=6e-2, atol=6e-2)

    print("KERNEL_OK")
</pallas_src>

<mosaic_0001>
module attributes {stable_mosaic.version = 11 : i64} {
  func.func @_att_kernel(%arg0: i32, %arg1: memref<16x256xf32, #tpu.memory_space<vmem>>, %arg2: memref<32x256xf32, #tpu.memory_space<vmem>>, %arg3: memref<16x1xf32, #tpu.memory_space<vmem>>, %arg4: memref<16x1xf32, #tpu.memory_space<vmem>>, %arg5: memref<8x16xf32, #tpu.memory_space<vmem>>, %arg6: memref<8x32xf32, #tpu.memory_space<vmem>>, %arg7: memref<8x1xf32, #tpu.memory_space<vmem>>, %arg8: memref<32x8xf32, #tpu.memory_space<vmem>>, %arg9: memref<32x1xf32, #tpu.memory_space<vmem>>, %arg10: memref<32x256xf32, #tpu.memory_space<vmem>>) attributes {dimension_semantics = [#tpu.dimension_semantics<parallel>], iteration_bounds = array<i64: 2>, scalar_prefetch = 0 : i64, scratch_operands = 0 : i64, tpu.core_type = #tpu.core_type<tc>, window_params = [{transform_indices = @transform_0, window_bounds = array<i64: 16, 256>}, {transform_indices = @transform_1, window_bounds = array<i64: 32, 256>}, {pipeline_mode = #tpu.pipeline_mode<synchronous>, transform_indices = @transform_2, window_bounds = array<i64: 16, 1>}, {pipeline_mode = #tpu.pipeline_mode<synchronous>, transform_indices = @transform_3, window_bounds = array<i64: 16, 1>}, {pipeline_mode = #tpu.pipeline_mode<synchronous>, transform_indices = @transform_4, window_bounds = array<i64: 8, 16>}, {pipeline_mode = #tpu.pipeline_mode<synchronous>, transform_indices = @transform_5, window_bounds = array<i64: 8, 32>}, {pipeline_mode = #tpu.pipeline_mode<synchronous>, transform_indices = @transform_6, window_bounds = array<i64: 8, 1>}, {pipeline_mode = #tpu.pipeline_mode<synchronous>, transform_indices = @transform_7, window_bounds = array<i64: 32, 8>}, {pipeline_mode = #tpu.pipeline_mode<synchronous>, transform_indices = @transform_8, window_bounds = array<i64: 32, 1>}, {transform_indices = @transform_9, window_bounds = array<i64: 32, 256>}]} {
    %c0 = arith.constant 0 : index
    %c0_0 = arith.constant 0 : index
    %0 = vector.load %arg1[%c0, %c0_0] : memref<16x256xf32, #tpu.memory_space<vmem>>, vector<16x256xf32>
    %c0_1 = arith.constant 0 : index
    %c0_2 = arith.constant 0 : index
    %1 = vector.load %arg3[%c0_1, %c0_2] : memref<16x1xf32, #tpu.memory_space<vmem>>, vector<16x1xf32>
    %2 = vector.broadcast %1 : vector<16x1xf32> to vector<16x256xf32>
    %3 = arith.mulf %0, %2 : vector<16x256xf32>
    %c0_3 = arith.constant 0 : index
    %c0_4 = arith.constant 0 : index
    %4 = vector.load %arg4[%c0_3, %c0_4] : memref<16x1xf32, #tpu.memory_space<vmem>>, vector<16x1xf32>
    %5 = vector.broadcast %4 : vector<16x1xf32> to vector<16x256xf32>
    %6 = arith.addf %3, %5 : vector<16x256xf32>
    %cst = arith.constant 0.000000e+00 : f32
    %7 = vector.broadcast %cst : f32 to vector<16x256xf32>
    %8 = arith.maximumf %6, %7 : vector<16x256xf32>
    %c0_5 = arith.constant 0 : index
    %c0_6 = arith.constant 0 : index
    %9 = vector.load %arg5[%c0_5, %c0_6] : memref<8x16xf32, #tpu.memory_space<vmem>>, vector<8x16xf32>
    %cst_7 = arith.constant dense<0.000000e+00> : vector<8x256xf32>
    %10 = tpu.matmul %9, %8, %cst_7 {dimension_numbers = #tpu.dot_dimension_numbers<[1], [0], [0], [1], [0, 0, 1, 1], [], []>} : vector<8x16xf32>, vector<16x256xf32>, vector<8x256xf32> -> vector<8x256xf32>
    %c0_8 = arith.constant 0 : index
    %c0_9 = arith.constant 0 : index
    %11 = vector.load %arg6[%c0_8, %c0_9] : memref<8x32xf32, #tpu.memory_space<vmem>>, vector<8x32xf32>
    %c0_10 = arith.constant 0 : index
    %c0_11 = arith.constant 0 : index
    %12 = vector.load %arg2[%c0_10, %c0_11] : memref<32x256xf32, #tpu.memory_space<vmem>>, vector<32x256xf32>
    %cst_12 = arith.constant dense<0.000000e+00> : vector<8x256xf32>
    %13 = tpu.matmul %11, %12, %cst_12 {dimension_numbers = #tpu.dot_dimension_numbers<[1], [0], [0], [1], [0, 0, 1, 1], [], []>} : vector<8x32xf32>, vector<32x256xf32>, vector<8x256xf32> -> vector<8x256xf32>
    %14 = arith.addf %10, %13 : vector<8x256xf32>
    %c0_13 = arith.constant 0 : index
    %c0_14 = arith.constant 0 : index
    %15 = vector.load %arg7[%c0_13, %c0_14] : memref<8x1xf32, #tpu.memory_space<vmem>>, vector<8x1xf32>
    %16 = vector.broadcast %15 : vector<8x1xf32> to vector<8x256xf32>
    %17 = arith.addf %14, %16 : vector<8x256xf32>
    %18 = math.tanh %17 : vector<8x256xf32>
    %c0_15 = arith.constant 0 : index
    %c0_16 = arith.constant 0 : index
    %19 = vector.load %arg8[%c0_15, %c0_16] : memref<32x8xf32, #tpu.memory_space<vmem>>, vector<32x8xf32>
    %cst_17 = arith.constant dense<0.000000e+00> : vector<32x256xf32>
    %20 = tpu.matmul %19, %18, %cst_17 {dimension_numbers = #tpu.dot_dimension_numbers<[1], [0], [0], [1], [0, 0, 1, 1], [], []>} : vector<32x8xf32>, vector<8x256xf32>, vector<32x256xf32> -> vector<32x256xf32>
    %c0_18 = arith.constant 0 : index
    %c0_19 = arith.constant 0 : index
    %21 = vector.load %arg9[%c0_18, %c0_19] : memref<32x1xf32, #tpu.memory_space<vmem>>, vector<32x1xf32>
    %22 = vector.broadcast %21 : vector<32x1xf32> to vector<32x256xf32>
    %23 = arith.addf %20, %22 : vector<32x256xf32>
    %24 = arith.negf %23 : vector<32x256xf32>
    %25 = math.exp %24 : vector<32x256xf32>
    %cst_20 = arith.constant 1.000000e+00 : f32
    %26 = vector.broadcast %cst_20 : f32 to vector<32x256xf32>
    %27 = arith.addf %26, %25 : vector<32x256xf32>
    %28 = arith.divf %26, %27 : vector<32x256xf32>
    %c0_21 = arith.constant 0 : index
    %c0_22 = arith.constant 0 : index
    %29 = vector.load %arg10[%c0_21, %c0_22] : memref<32x256xf32, #tpu.memory_space<vmem>>, vector<32x256xf32>
    tpu.vector_store %arg10[%c0_21, %c0_22], %28 {strides = array<i32>} : memref<32x256xf32, #tpu.memory_space<vmem>>, vector<32x256xf32>,
    return
  }
  func.func @transform_0(%arg0: i32) -> (i32, i32) {
    %c0_i32 = arith.constant 0 : i32
    %c0_i32_0 = arith.constant 0 : i32
    return %c0_i32, %arg0 : i32, i32
  }
  func.func @transform_1(%arg0: i32) -> (i32, i32) {
    %c0_i32 = arith.constant 0 : i32
    %c0_i32_0 = arith.constant 0 : i32
    return %c0_i32, %arg0 : i32, i32
  }
  func.func @transform_2(%arg0: i32) -> (i32, i32) {
    %c0_i32 = arith.constant 0 : i32
    %c0_i32_0 = arith.constant 0 : i32
    %c0_i32_1 = arith.constant 0 : i32
    return %c0_i32, %c0_i32_0 : i32, i32
  }
  func.func @transform_3(%arg0: i32) -> (i32, i32) {
    %c0_i32 = arith.constant 0 : i32
    %c0_i32_0 = arith.constant 0 : i32
    %c0_i32_1 = arith.constant 0 : i32
    return %c0_i32, %c0_i32_0 : i32, i32
  }
  func.func @transform_4(%arg0: i32) -> (i32, i32) {
    %c0_i32 = arith.constant 0 : i32
    %c0_i32_0 = arith.constant 0 : i32
    %c0_i32_1 = arith.constant 0 : i32
    return %c0_i32, %c0_i32_0 : i32, i32
  }
  func.func @transform_5(%arg0: i32) -> (i32, i32) {
    %c0_i32 = arith.constant 0 : i32
    %c0_i32_0 = arith.constant 0 : i32
    %c0_i32_1 = arith.constant 0 : i32
    return %c0_i32, %c0_i32_0 : i32, i32
  }
  func.func @transform_6(%arg0: i32) -> (i32, i32) {
    %c0_i32 = arith.constant 0 : i32
    %c0_i32_0 = arith.constant 0 : i32
    %c0_i32_1 = arith.constant 0 : i32
    return %c0_i32, %c0_i32_0 : i32, i32
  }
  func.func @transform_7(%arg0: i32) -> (i32, i32) {
    %c0_i32 = arith.constant 0 : i32
    %c0_i32_0 = arith.constant 0 : i32
    %c0_i32_1 = arith.constant 0 : i32
    return %c0_i32, %c0_i32_0 : i32, i32
  }
  func.func @transform_8(%arg0: i32) -> (i32, i32) {
    %c0_i32 = arith.constant 0 : i32
    %c0_i32_0 = arith.constant 0 : i32
    %c0_i32_1 = arith.constant 0 : i32
    return %c0_i32, %c0_i32_0 : i32, i32
  }
  func.func @transform_9(%arg0: i32) -> (i32, i32) {
    %c0_i32 = arith.constant 0 : i32
    %c0_i32_0 = arith.constant 0 : i32
    return %c0_i32, %arg0 : i32, i32
  }
}

</mosaic_0001>

<llo_original>
// kernel: tpu_custom_call.1
$region0: #{tpu_custom_call.1}
  #allocation0 [shape = 'u32[]', space=smem, size = 0x4, offset = 0x4, fixed_abs, tag = 'smem constant byte address 0x4 - core index']
  #allocation1 [shape = 'u32[144,128]{1,0:T(1,128)}', space=vmem, size = 0x12000, scoped, tag = 'internal scratch']
  %s0 = inlined_call_operand.vmem [shape: f32[16,512], index: 0, kind: input, shape index: {}]
  %s1 = inlined_call_operand.hbm [shape: f32[32,512], index: 1, kind: input, shape index: {}]
  %s2 = inlined_call_operand.vmem [shape: f32[16,1], index: 2, kind: input, shape index: {}]
  %s3 = inlined_call_operand.vmem [shape: f32[16,1], index: 3, kind: input, shape index: {}]
  %s4 = inlined_call_operand.vmem [shape: f32[8,16], index: 4, kind: input, shape index: {}]
  %s5 = inlined_call_operand.vmem [shape: f32[8,32], index: 5, kind: input, shape index: {}]
  %s6 = inlined_call_operand.vmem [shape: f32[8,1], index: 6, kind: input, shape index: {}]
  %s7 = inlined_call_operand.vmem [shape: f32[32,8], index: 7, kind: input, shape index: {}]
  %s8 = inlined_call_operand.vmem [shape: f32[32,1], index: 8, kind: input, shape index: {}]
  %s9 = inlined_call_operand.hbm [shape: f32[32,512], index: 9, kind: output, shape index: {}]
  %s10 = sld [smem:[#allocation0]]
  $region96: #{tpu_custom_call.1} parent=0
    _
  %s12 = ssub.s32 1, %s10
  %s13 = scalar_select 0, %s12, %s10
  $region1: #{tpu_custom_call.1} parent=0
    #allocation2 [shape = 'u8[32768]{0}', space=vmem, size = 0x8000, scoped, tag = 'input window, operand 0']
    #allocation3 [shape = 'u8[65536]{0}', space=vmem, size = 0x10000, scoped, tag = 'input window, operand 1']
    #allocation4 [shape = 's32[2]{0}', space=sflag, size = 0x8, scoped, tag = 'scoped memory for tpu_custom_call.1']
    #allocation5 [shape = 's32[2]{0}', space=sflag, size = 0x8, scoped, tag = 'scoped memory for tpu_custom_call.1']
    #allocation6 [shape = 'u8[65536]{0}', space=vmem, size = 0x10000, scoped, tag = 'output window, operand 0']
    %14 = vsyncpa [#allocation4], 0
    %s15 = scalar_lea.sflag [#allocation4], 1
    %16 = vsyncpa %s15, 0
    %17 = vsyncpa [#allocation5], 0
    %s18 = scalar_lea.sflag [#allocation5], 1
    %19 = vsyncpa %s18, 0
    loop: start=0, step=1, limit=4
    $region2: #{tpu_custom_call.1} parent=1 // loop_pre_header
      _
    $region3: #{tpu_custom_call.1} parent=1 // loop_header
      %s21 = sphi 0, %s25
      %p22 = scmp.ge.s32.totalorder %s21, 4
      %s31 = sphi 0, %s33
      %s34 = sphi 0, %s31
      %s35 = sphi 0, %s34
      %s51 = sphi 0, %s35
      %s57 = sphi 0, %s59
      %s60 = sphi 0, %s57
      %s61 = sphi 0, %s60
      %s77 = sphi 0, %s61
      %s81 = sphi 0, %s81
      %s83 = sphi 0, %s81
      %s84 = sphi 0, %s83
      %s98 = sphi 0, %s84
      %s102 = sphi 0, %s102
      %s104 = sphi 0, %s102
      %s105 = sphi 0, %s104
      %s119 = sphi 0, %s105
      %s123 = sphi 0, %s123
      %s125 = sphi 0, %s123
      %s126 = sphi 0, %s125
      %s140 = sphi 0, %s126
      %s144 = sphi 0, %s144
      %s146 = sphi 0, %s144
      %s147 = sphi 0, %s146
      %s161 = sphi 0, %s147
      %s165 = sphi 0, %s165
      %s167 = sphi 0, %s165
      %s168 = sphi 0, %s167
      %s182 = sphi 0, %s168
      %s186 = sphi 0, %s186
      %s188 = sphi 0, %s186
      %s189 = sphi 0, %s188
      %s203 = sphi 0, %s189
      %s207 = sphi 0, %s207
      %s209 = sphi 0, %s207
      %s210 = sphi 0, %s209
      %s224 = sphi 0, %s210
      %s230 = sphi 0, %s232
      %s233 = sphi 0, %s230
      %s234 = sphi 0, %s233
      %s250 = sphi 0, %s234
    $region4: #{tpu_custom_call.1} parent=1 // loop_header_branch
      %24 = sbr.rel (%p22) target = $region8
    $region5: #{tpu_custom_call.1} parent=1 // loop_body
      %s26 = ssub.s32 %s21, 1
      %s27 = ssub.s32 %s21, 2
      %s28 = sadd.s32 %s21, 1
      %s29 = ssub.s32 %s21, %s28
      %p30 = scmp.eq.s32.totalorder %s29, 0
      %s32 = sadd.s32 %s31, 1
      %s33 = scalar_select %p30, %s31, %s32
      %p36 = pneg %p30
      %p37 = scmp.eq.s32.totalorder %s21, 1
      %p38 = por %p36, %p37
      %p39 = scmp.ne.s32.totalorder %s31, %s34
      %p40 = scmp.eq.s32.totalorder %s21, 0
      %p41 = por %p39, %p40
      %p42 = scmp.ne.s32.totalorder %s31, %s34
      %p43 = scmp.eq.s32.totalorder %s26, 1
      %p44 = por %p42, %p43
      %p45 = scmp.ne.s32.totalorder %s34, %s35
      %p46 = scmp.eq.s32.totalorder %s26, 0
      %p47 = por %p45, %p46
      %p48 = scmp.ne.s32.totalorder %s34, %s35
      %p49 = scmp.eq.s32.totalorder %s27, 1
      %p50 = por %p48, %p49
      %p52 = scmp.ne.s32.totalorder %s35, %s51
      %p53 = scmp.eq.s32.totalorder %s27, 0
      %p54 = por %p52, %p53
      %s55 = ssub.s32 %s21, %s28
      %p56 = scmp.eq.s32.totalorder %s55, 0
      %s58 = sadd.s32 %s57, 1
      %s59 = scalar_select %p56, %s57, %s58
      %p62 = pneg %p56
      %p63 = scmp.eq.s32.totalorder %s21, 1
      %p64 = por %p62, %p63
      %p65 = scmp.ne.s32.totalorder %s57, %s60
      %p66 = scmp.eq.s32.totalorder %s21, 0
      %p67 = por %p65, %p66
      %p68 = scmp.ne.s32.totalorder %s57, %s60
      %p69 = scmp.eq.s32.totalorder %s26, 1
      %p70 = por %p68, %p69
      %p71 = scmp.ne.s32.totalorder %s60, %s61
      %p72 = scmp.eq.s32.totalorder %s26, 0
      %p73 = por %p71, %p72
      %p74 = scmp.ne.s32.totalorder %s60, %s61
      %p75 = scmp.eq.s32.totalorder %s27, 1
      %p76 = por %p74, %p75
      %p78 = scmp.ne.s32.totalorder %s61, %s77
      %p79 = scmp.eq.s32.totalorder %s27, 0
      %p80 = por %p78, %p79
      %s82 = sadd.s32 %s81, 1
      %p85 = scmp.eq.s32.totalorder %s21, 1
      %p86 = scmp.ne.s32.totalorder %s81, %s83
      %p87 = scmp.eq.s32.totalorder %s21, 0
      %p88 = por %p86, %p87
      %p89 = scmp.ne.s32.totalorder %s81, %s83
      %p90 = scmp.eq.s32.totalorder %s26, 1
      %p91 = por %p89, %p90
      %p92 = scmp.ne.s32.totalorder %s83, %s84
      %p93 = scmp.eq.s32.totalorder %s26, 0
      %p94 = por %p92, %p93
      %p95 = scmp.ne.s32.totalorder %s83, %s84
      %p96 = scmp.eq.s32.totalorder %s27, 1
      %p97 = por %p95, %p96
      %p99 = scmp.ne.s32.totalorder %s84, %s98
      %p100 = scmp.eq.s32.totalorder %s27, 0
      %p101 = por %p99, %p100
      %s103 = sadd.s32 %s102, 1
      %p106 = scmp.eq.s32.totalorder %s21, 1
      %p107 = scmp.ne.s32.totalorder %s102, %s104
      %p108 = scmp.eq.s32.totalorder %s21, 0
      %p109 = por %p107, %p108
      %p110 = scmp.ne.s32.totalorder %s102, %s104
      %p111 = scmp.eq.s32.totalorder %s26, 1
      %p112 = por %p110, %p111
      %p113 = scmp.ne.s32.totalorder %s104, %s105
      %p114 = scmp.eq.s32.totalorder %s26, 0
      %p115 = por %p113, %p114
      %p116 = scmp.ne.s32.totalorder %s104, %s105
      %p117 = scmp.eq.s32.totalorder %s27, 1
      %p118 = por %p116, %p117
      %p120 = scmp.ne.s32.totalorder %s105, %s119
      %p121 = scmp.eq.s32.totalorder %s27, 0
      %p122 = por %p120, %p121
      %s124 = sadd.s32 %s123, 1
      %p127 = scmp.eq.s32.totalorder %s21, 1
      %p128 = scmp.ne.s32.totalorder %s123, %s125
      %p129 = scmp.eq.s32.totalorder %s21, 0
      %p130 = por %p128, %p129
      %p131 = scmp.ne.s32.totalorder %s123, %s125
      %p132 = scmp.eq.s32.totalorder %s26, 1
      %p133 = por %p131, %p132
      %p134 = scmp.ne.s32.totalorder %s125, %s126
      %p135 = scmp.eq.s32.totalorder %s26, 0
      %p136 = por %p134, %p135
      %p137 = scmp.ne.s32.totalorder %s125, %s126
      %p138 = scmp.eq.s32.totalorder %s27, 1
      %p139 = por %p137, %p138
      %p141 = scmp.ne.s32.totalorder %s126, %s140
      %p142 = scmp.eq.s32.totalorder %s27, 0
      %p143 = por %p141, %p142
      %s145 = sadd.s32 %s144, 1
      %p148 = scmp.eq.s32.totalorder %s21, 1
      %p149 = scmp.ne.s32.totalorder %s144, %s146
      %p150 = scmp.eq.s32.totalorder %s21, 0
      %p151 = por %p149, %p150
      %p152 = scmp.ne.s32.totalorder %s144, %s146
      %p153 = scmp.eq.s32.totalorder %s26, 1
      %p154 = por %p152, %p153
      %p155 = scmp.ne.s32.totalorder %s146, %s147
      %p156 = scmp.eq.s32.totalorder %s26, 0
      %p157 = por %p155, %p156
      %p158 = scmp.ne.s32.totalorder %s146, %s147
      %p159 = scmp.eq.s32.totalorder %s27, 1
      %p160 = por %p158, %p159
      %p162 = scmp.ne.s32.totalorder %s147, %s161
      %p163 = scmp.eq.s32.totalorder %s27, 0
      %p164 = por %p162, %p163
      %s166 = sadd.s32 %s165, 1
      %p169 = scmp.eq.s32.totalorder %s21, 1
      %p170 = scmp.ne.s32.totalorder %s165, %s167
      %p171 = scmp.eq.s32.totalorder %s21, 0
      %p172 = por %p170, %p171
      %p173 = scmp.ne.s32.totalorder %s165, %s167
      %p174 = scmp.eq.s32.totalorder %s26, 1
      %p175 = por %p173, %p174
      %p176 = scmp.ne.s32.totalorder %s167, %s168
      %p177 = scmp.eq.s32.totalorder %s26, 0
      %p178 = por %p176, %p177
      %p179 = scmp.ne.s32.totalorder %s167, %s168
      %p180 = scmp.eq.s32.totalorder %s27, 1
      %p181 = por %p179, %p180
      %p183 = scmp.ne.s32.totalorder %s168, %s182
      %p184 = scmp.eq.s32.totalorder %s27, 0
      %p185 = por %p183, %p184
      %s187 = sadd.s32 %s186, 1
      %p190 = scmp.eq.s32.totalorder %s21, 1
      %p191 = scmp.ne.s32.totalorder %s186, %s188
      %p192 = scmp.eq.s32.totalorder %s21, 0
      %p193 = por %p191, %p192
      %p194 = scmp.ne.s32.totalorder %s186, %s188
      %p195 = scmp.eq.s32.totalorder %s26, 1
      %p196 = por %p194, %p195
      %p197 = scmp.ne.s32.totalorder %s188, %s189
      %p198 = scmp.eq.s32.totalorder %s26, 0
      %p199 = por %p197, %p198
      %p200 = scmp.ne.s32.totalorder %s188, %s189
      %p201 = scmp.eq.s32.totalorder %s27, 1
      %p202 = por %p200, %p201
      %p204 = scmp.ne.s32.totalorder %s189, %s203
      %p205 = scmp.eq.s32.totalorder %s27, 0
      %p206 = por %p204, %p205
      %s208 = sadd.s32 %s207, 1
      %p211 = scmp.eq.s32.totalorder %s21, 1
      %p212 = scmp.ne.s32.totalorder %s207, %s209
      %p213 = scmp.eq.s32.totalorder %s21, 0
      %p214 = por %p212, %p213
      %p215 = scmp.ne.s32.totalorder %s207, %s209
      %p216 = scmp.eq.s32.totalorder %s26, 1
      %p217 = por %p215, %p216
      %p218 = scmp.ne.s32.totalorder %s209, %s210
      %p219 = scmp.eq.s32.totalorder %s26, 0
      %p220 = por %p218, %p219
      %p221 = scmp.ne.s32.totalorder %s209, %s210
      %p222 = scmp.eq.s32.totalorder %s27, 1
      %p223 = por %p221, %p222
      %p225 = scmp.ne.s32.totalorder %s210, %s224
      %p226 = scmp.eq.s32.totalorder %s27, 0
      %p227 = por %p225, %p226
      %s228 = ssub.s32 %s21, %s28
      %p229 = scmp.eq.s32.totalorder %s228, 0
      %s231 = sadd.s32 %s230, 1
      %s232 = scalar_select %p229, %s230, %s231
      %p235 = pneg %p229
      %p236 = scmp.eq.s32.totalorder %s21, 1
      %p237 = por %p235, %p236
      %p238 = scmp.ne.s32.totalorder %s230, %s233
      %p239 = scmp.eq.s32.totalorder %s21, 0
      %p240 = por %p238, %p239
      %p241 = scmp.ne.s32.totalorder %s230, %s233
      %p242 = scmp.eq.s32.totalorder %s26, 1
      %p243 = por %p241, %p242
      %p244 = scmp.ne.s32.totalorder %s233, %s234
      %p245 = scmp.eq.s32.totalorder %s26, 0
      %p246 = por %p244, %p245
      %p247 = scmp.ne.s32.totalorder %s233, %s234
      %p248 = scmp.eq.s32.totalorder %s27, 1
      %p249 = por %p247, %p248
      %p251 = scmp.ne.s32.totalorder %s234, %s250
      %p252 = scmp.eq.s32.totalorder %s27, 0
      %p253 = por %p251, %p252
      %p254 = scmp.le.s32.totalorder 1, %s21
      %p255 = scmp.lt.s32.totalorder %s21, 3
      %p256 = pnand %p254, %p255
      %p257 = pneg %p256
      // Predicated region
      $region9: #{tpu_custom_call.1} parent=5 // pred_check
        _
      $region10: #{tpu_custom_call.1} parent=5 // pred_check_branch
        %259 = sbr.rel (%p256) target = $region12
      $region11: #{tpu_custom_call.1} parent=5 // pred_region
        %s260 = ssub.s32 %s21, 1
        // Predicated region
        $region13: #{tpu_custom_call.1} parent=11 // pred_check
          %p261 = pneg %p94
        $region14: #{tpu_custom_call.1} parent=11 // pred_check_branch
          %263 = sbr.rel (%p261) target = $region16
        $region15: #{tpu_custom_call.1} parent=11 // pred_region
          _
        $region16: #{tpu_custom_call.1} parent=11 // pred_fallthru
          _
        // Predicated region
        $region17: #{tpu_custom_call.1} parent=11 // pred_check
          %p264 = pneg %p115
        $region18: #{tpu_custom_call.1} parent=11 // pred_check_branch
          %266 = sbr.rel (%p264) target = $region20
        $region19: #{tpu_custom_call.1} parent=11 // pred_region
          _
        $region20: #{tpu_custom_call.1} parent=11 // pred_fallthru
          _
        // Predicated region
        $region21: #{tpu_custom_call.1} parent=11 // pred_check
          %p267 = pneg %p136
        $region22: #{tpu_custom_call.1} parent=11 // pred_check_branch
          %269 = sbr.rel (%p267) target = $region24
        $region23: #{tpu_custom_call.1} parent=11 // pred_region
          _
        $region24: #{tpu_custom_call.1} parent=11 // pred_fallthru
          _
        // Predicated region
        $region25: #{tpu_custom_call.1} parent=11 // pred_check
          %p270 = pneg %p157
        $region26: #{tpu_custom_call.1} parent=11 // pred_check_branch
          %272 = sbr.rel (%p270) target = $region28
        $region27: #{tpu_custom_call.1} parent=11 // pred_region
          _
        $region28: #{tpu_custom_call.1} parent=11 // pred_fallthru
          _
        // Predicated region
        $region29: #{tpu_custom_call.1} parent=11 // pred_check
          %p273 = pneg %p178
        $region30: #{tpu_custom_call.1} parent=11 // pred_check_branch
          %275 = sbr.rel (%p273) target = $region32
        $region31: #{tpu_custom_call.1} parent=11 // pred_region
          _
        $region32: #{tpu_custom_call.1} parent=11 // pred_fallthru
          _
        // Predicated region
        $region33: #{tpu_custom_call.1} parent=11 // pred_check
          %p276 = pneg %p199
        $region34: #{tpu_custom_call.1} parent=11 // pred_check_branch
          %278 = sbr.rel (%p276) target = $region36
        $region35: #{tpu_custom_call.1} parent=11 // pred_region
          _
        $region36: #{tpu_custom_call.1} parent=11 // pred_fallthru
          _
        // Predicated region
        $region37: #{tpu_custom_call.1} parent=11 // pred_check
          %p279 = pneg %p220
        $region38: #{tpu_custom_call.1} parent=11 // pred_check_branch
          %281 = sbr.rel (%p279) target = $region40
        $region39: #{tpu_custom_call.1} parent=11 // pred_region
          _
        $region40: #{tpu_custom_call.1} parent=11 // pred_fallthru
          _
      $region12: #{tpu_custom_call.1} parent=5 // pred_fallthru
        _
      %p282 = scmp.lt.s32.totalorder %s21, 2
      // Predicated region
      $region41: #{tpu_custom_call.1} parent=5 // pred_check
        %p283 = pneg %p282
      $region42: #{tpu_custom_call.1} parent=5 // pred_check_branch
        %285 = sbr.rel (%p283) target = $region44
      $region43: #{tpu_custom_call.1} parent=5 // pred_region
        // Predicated region
        $region45: #{tpu_custom_call.1} parent=43 // pred_check
          %p286 = pneg %p41
        $region46: #{tpu_custom_call.1} parent=43 // pred_check_branch
          %288 = sbr.rel (%p286) target = $region48
        $region47: #{tpu_custom_call.1} parent=43 // pred_region
          %s289 = sand.u32 %s31, 1
          %s290 = sand.u32 %s31, 1
          %s291 = smul.addr %s290, 32
          %s292 = scalar_lea.vmem [#allocation2], %s291
          %s293 = smul.u32 2, %s21
          %s294 = smul.addr %s293, 8
          %s295 = scalar_lea.vmem %s0, %s294
          // Predicated region
          $region49: #{tpu_custom_call.1} parent=47 // pred_check
            _
          $region50: #{tpu_custom_call.1} parent=47 // pred_check_branch
            %297 = sbr.rel (0) target = $region52
          $region51: #{tpu_custom_call.1} parent=47 // pred_region
            // Predicated region
            $region53: #{tpu_custom_call.1} parent=51 // pred_check
              _
            $region54: #{tpu_custom_call.1} parent=51 // pred_check_branch
              %299 = sbr.rel (0) target = $region56
            $region55: #{tpu_custom_call.1} parent=51 // pred_region
              loop: start=0, step=1, limit=1
              $region57: #{tpu_custom_call.1} parent=55 // loop_pre_header
                _
              $region58: #{tpu_custom_call.1} parent=55 // loop_header
                %s301 = sphi 0, %s305
                %p302 = scmp.ge.s32.totalorder %s301, 1
                %s306 = sphi %s295, %s295
                %s307 = sphi %s292, %s292
              $region59: #{tpu_custom_call.1} parent=55 // loop_header_branch
                %304 = sbr.rel (%p302) target = $region63
              $region60: #{tpu_custom_call.1} parent=55 // loop_body
                %v308 = vld [vmem:[%s306] sm:$0xff]
                %309 = vst [vmem:[%s307] sm:$0xff] %v308
                %v310 = vld [vmem:[%s306 + $0x8] sm:$0xff]
                %311 = vst [vmem:[%s307 + $0x8] sm:$0xff] %v310
                %v312 = vld [vmem:[%s306 + $0x20] sm:$0xff]
                %313 = vst [vmem:[%s307 + $0x10] sm:$0xff] %v312
                %v314 = vld [vmem:[%s306 + $0x28] sm:$0xff]
                %315 = vst [vmem:[%s307 + $0x18] sm:$0xff] %v314
              $region61: #{tpu_custom_call.1} parent=55 // loop_footer
                %s305 = sadd.s32 1, %s301
              $region62: #{tpu_custom_call.1} parent=55 // loop_footer_branch
                %300 = sbr.rel target = $region58
              $region63: #{tpu_custom_call.1} parent=55 // loop_exit
                _
            $region56: #{tpu_custom_call.1} parent=51 // pred_fallthru
              _
            // Predicated region
            $region64: #{tpu_custom_call.1} parent=51 // pred_check
              _
            $region65: #{tpu_custom_call.1} parent=51 // pred_check_branch
              %317 = sbr.rel target = $region67
            $region66: #{tpu_custom_call.1} parent=51 // pred_region
              _
            $region67: #{tpu_custom_call.1} parent=51 // pred_fallthru
              _
          $region52: #{tpu_custom_call.1} parent=47 // pred_fallthru
            _
          %318 = vnop
        $region48: #{tpu_custom_call.1} parent=43 // pred_fallthru
          _
        // Predicated region
        $region68: #{tpu_custom_call.1} parent=43 // pred_check
          %p319 = pneg %p67
        $region69: #{tpu_custom_call.1} parent=43 // pred_check_branch
          %321 = sbr.rel (%p319) target = $region71
        $region70: #{tpu_custom_call.1} parent=43 // pred_region
          %s322 = sand.u32 %s57, 1
          %s323 = scalar_lea.sflag [#allocation4], %s322
          %s324 = sand.u32 %s57, 1
          %s325 = smul.addr %s324, 64
          %s326 = scalar_lea.vmem [#allocation3], %s325
          %s327 = smul.u32 2, %s21
          %s329 = ssub.s32 1024, 1024
          %330 = vsyncadd %s323, %s329
          %s331 = smul.addr %s327, 128
          %s332 = scalar_lea.hbm %s1, %s331
          %s333 = sshll.u32 %s326, 4
          %s334 = int_to_ptr.vmem [resolvable:$true] %s333
          %339 = dma.hbm_to_vmem [thread:$0]  %s332, 1024, %s334, %s323, 512, 256, 16
        $region71: #{tpu_custom_call.1} parent=43 // pred_fallthru
          _
      $region44: #{tpu_custom_call.1} parent=5 // pred_fallthru
        _
      %p340 = scmp.le.s32.totalorder 1, %s21
      %p341 = scmp.lt.s32.totalorder %s21, 3
      %p342 = pnand %p340, %p341
      %p343 = pneg %p342
      // Predicated region
      $region72: #{tpu_custom_call.1} parent=5 // pred_check
        _
      $region73: #{tpu_custom_call.1} parent=5 // pred_check_branch
        %345 = sbr.rel (%p342) target = $region75
      $region74: #{tpu_custom_call.1} parent=5 // pred_region
        %s346 = ssub.s32 %s21, 1
        %s347 = sand.u32 %s34, 1
        %s348 = sand.u32 %s34, 1
        %s349 = smul.addr %s348, 32
        %s350 = scalar_lea.vmem [#allocation2], %s349
        // Predicated region
        $region76: #{tpu_custom_call.1} parent=74 // pred_check
          %p351 = pneg %p47
        $region77: #{tpu_custom_call.1} parent=74 // pred_check_branch
          %353 = sbr.rel (%p351) target = $region79
        $region78: #{tpu_custom_call.1} parent=74 // pred_region
          _
        $region79: #{tpu_custom_call.1} parent=74 // pred_fallthru
          _
        %s354 = sand.u32 %s60, 1
        %s355 = scalar_lea.sflag [#allocation4], %s354
        %s356 = sand.u32 %s60, 1
        %s357 = smul.addr %s356, 64
        %s358 = scalar_lea.vmem [#allocation3], %s357
        // Predicated region
        $region80: #{tpu_custom_call.1} parent=74 // pred_check
          %p359 = pneg %p73
        $region81: #{tpu_custom_call.1} parent=74 // pred_check_branch
          %361 = sbr.rel (%p359) target = $region83
        $region82: #{tpu_custom_call.1} parent=74 // pred_region
          %362 = dma.done %s355, 1024
        $region83: #{tpu_custom_call.1} parent=74 // pred_fallthru
          _
        %s363 = sand.u32 %s34, 1
        %s364 = sand.u32 %s34, 1
        %s365 = smul.addr %s364, 32
        %s366 = scalar_lea.vmem [#allocation2], %s365
        %p367 = pneg %p47
        %p368 = pneg %p44
        %s369 = sand.u32 %s60, 1
        %s370 = scalar_lea.sflag [#allocation4], %s369
        %s371 = sand.u32 %s60, 1
        %s372 = smul.addr %s371, 64
        %s373 = scalar_lea.vmem [#allocation3], %s372
        %p374 = pneg %p73
        %p375 = pneg %p70
        %p376 = pneg %p94
        %p377 = pneg %p91
        %p378 = pneg %p115
        %p379 = pneg %p112
        %p380 = pneg %p136
        %p381 = pneg %p133
        %p382 = pneg %p157
        %p383 = pneg %p154
        %p384 = pneg %p178
        %p385 = pneg %p175
        %p386 = pneg %p199
        %p387 = pneg %p196
        %p388 = pneg %p220
        %p389 = pneg %p217
        %p390 = pneg %p246
        %p391 = pneg %p243
        %s392 = sand.u32 %s233, 1
        %s393 = scalar_lea.sflag [#allocation5], %s392
        %s394 = sand.u32 %s233, 1
        %s395 = smul.addr %s394, 64
        %s396 = scalar_lea.vmem [#allocation6], %s395
        %s397 = smul.u32 2, %s26
        %s398 = smul.u32 2, %s26
        %s399 = smul.u32 2, %s26
        %v400 = vld [vmem:[%s350] sm:$0xff]
        %v401 = vld [vmem:[%s350 + $0x8] sm:$0xff]
        %v402 = vld [vmem:[%s350 + $0x10] sm:$0xff]
        %v403 = vld [vmem:[%s350 + $0x18] sm:$0xff]
        %v404 = vld [vmem:[%s2] sm:$0xff]
        %v405 = vld [vmem:[%s2 + $0x8] sm:$0xff]
        %407 = vset.pattern.permute.xlu0 0
        %408 = vperm.xlu0 %407, %v404
        %v409 = vpop.permute.xlu0 %408
        %412 = vset.pattern.permute.xlu0 0
        %413 = vperm.xlu0 %412, %v405
        %v414 = vpop.permute.xlu0 %413
        %v416 = vmul.f32 %v400, %v409
        %v417 = vmul.f32 %v401, %v409
        %v418 = vmul.f32 %v402, %v414
        %v419 = vmul.f32 %v403, %v414
        %v420 = vld [vmem:[%s3] sm:$0xff]
        %v421 = vld [vmem:[%s3 + $0x8] sm:$0xff]
        %423 = vset.pattern.permute.xlu0 0
        %424 = vperm.xlu0 %423, %v420
        %v425 = vpop.permute.xlu0 %424
        %428 = vset.pattern.permute.xlu0 0
        %429 = vperm.xlu0 %428, %v421
        %v430 = vpop.permute.xlu0 %429
        %v432 = vadd.f32 %v416, %v425
        %v433 = vadd.f32 %v417, %v425
        %v434 = vadd.f32 %v418, %v430
        %v435 = vadd.f32 %v419, %v430
        %v436 = vmax.f32 %v432, 0.0
        %v437 = vmax.f32 %v433, 0.0
        %v438 = vmax.f32 %v434, 0.0
        %v439 = vmax.f32 %v435, 0.0
        %v440 = vld [vmem:[%s4] sm:$0xff]
        %v441 = vld [vmem:[%s5] sm:$0xff]
        %v442 = vld [vmem:[%s358] sm:$0xff]
        %v443 = vld [vmem:[%s358 + $0x8] sm:$0xff]
        %v444 = vld [vmem:[%s358 + $0x10] sm:$0xff]
        %v445 = vld [vmem:[%s358 + $0x18] sm:$0xff]
        %v446 = vld [vmem:[%s358 + $0x20] sm:$0xff]
        %v447 = vld [vmem:[%s358 + $0x28] sm:$0xff]
        %v448 = vld [vmem:[%s358 + $0x30] sm:$0xff]
        %v449 = vld [vmem:[%s358 + $0x38] sm:$0xff]
        %vm450 = vcmask 261120
        %v452 = vsel %vm450, %v441, 0
        %454 = vmatprep.subr.mxu0 %v443
        %455 = vmatpush1.msra.mxu0 %v442
        %456 = vmatprep.subr.mxu0 %v445
        %457 = vmatpush1.msra.mxu0 %v444
        %458 = vmatprep.subr.mxu0 %v447
        %459 = vmatpush1.msra.mxu0 %v446
        %460 = vmatprep.subr.mxu0 %v449
        %461 = vmatpush1.msra.mxu0 %v448
        %462 = vmatprep.subr.mxu0 0.0
        %463 = vmatpush1.msra.mxu0 0.0
        %464 = vmatprep.subr.mxu0 0.0
        %465 = vmatpush1.msra.mxu0 0.0
        %466 = vmatprep.subr.mxu0 0.0
        %467 = vmatpush1.msra.mxu0 0.0
        %468 = vmatprep.subr.mxu0 0.0
        %469 = vmatpush1.msra.mxu0 0.0
        %470 = vmatprep.subr.mxu0 0.0
        %471 = vmatpush1.msra.mxu0 0.0
        %472 = vmatprep.subr.mxu0 0.0
        %473 = vmatpush1.msra.mxu0 0.0
        %474 = vmatprep.subr.mxu0 0.0
        %475 = vmatpush1.msra.mxu0 0.0
        %476 = vmatprep.subr.mxu0 0.0
        %477 = vmatpush1.msra.mxu0 0.0
        %478 = vmatprep.subr.mxu0 0.0
        %479 = vmatpush1.msra.mxu0 0.0
        %480 = vmatprep.subr.mxu0 0.0
        %481 = vmatpush1.msra.mxu0 0.0
        %482 = vmatprep.subr.mxu0 0.0
        %483 = vmatpush1.msra.mxu0 0.0
        %484 = vmatprep.subr.mxu0 0.0
        %485 = vmatpush1.msra.mxu0 0.0
        %486 = vmatprep.subr.mxu0 0.0
        %487 = vmatpush1.msra.mxu0 0.0
        %488 = vmatprep.subr.mxu0 0.0
        %489 = vmatpush1.msra.mxu0 0.0
        %490 = vmatprep.subr.mxu0 0.0
        %491 = vmatpush1.msra.mxu0 0.0
        %492 = vmatprep.subr.mxu0 0.0
        %493 = vmatpush1.msra.mxu0 0.0
        %494 = vmatprep.subr.mxu0 0.0
        %495 = vmatpush1.msra.mxu0 0.0
        %496 = vmatprep.subr.mxu0 0.0
        %497 = vmatpush1.msra.mxu0 0.0
        %498 = vmatprep.subr.mxu0 0.0
        %499 = vmatpush1.msra.mxu0 0.0
        %500 = vmatprep.subr.mxu0 0.0
        %501 = vmatpush1.msra.mxu0 0.0
        %502 = vmatprep.subr.mxu0 0.0
        %503 = vmatpush1.msra.mxu0 0.0
        %504 = vmatprep.subr.mxu0 0.0
        %505 = vmatpush1.msra.mxu0 0.0
        %506 = vmatprep.subr.mxu0 0.0
        %507 = vmatpush1.msra.mxu0 0.0
        %508 = vmatprep.subr.mxu0 0.0
        %509 = vmatpush1.msra.mxu0 0.0
        %510 = vmatprep.subr.mxu0 0.0
        %511 = vmatpush1.msra.mxu0 0.0
        %512 = vmatprep.subr.mxu0 0.0
        %513 = vmatpush1.msra.mxu0 0.0
        %514 = vmatprep.subr.mxu0 0.0
        %515 = vmatpush1.msra.mxu0 0.0
        %516 = vmatprep.subr.mxu0 0.0
        %517 = vmatpush1.msra.mxu0 0.0
        %518 = vmatprep.mubr.f32.mxu0 0.0
        %519 = vmatmul.mubr.f32.gmra.mrb[0].mxu0 %v452
        %v520 = vpop.f32.mrb[0].mxu0
        %v521 = vadd.f32 0.0, %v520
        %v522 = vpop.f32.mrb[0].mxu0
        %v523 = vadd.f32 0.0, %v522
        %524 = vdwg.mxu0
        %vm525 = vcmask 130048
        %v527 = vsel %vm525, %v440, 0
        %529 = vmatprep.subr.mxu0 %v437
        %530 = vmatpush1.msra.mxu0 %v436
        %531 = vmatprep.subr.mxu0 %v439
        %532 = vmatpush1.msra.mxu0 %v438
        %533 = vmatprep.subr.mxu0 0.0
        %534 = vmatpush1.msra.mxu0 0.0
        %535 = vmatprep.subr.mxu0 0.0
        %536 = vmatpush1.msra.mxu0 0.0
        %537 = vmatprep.subr.mxu0 0.0
        %538 = vmatpush1.msra.mxu0 0.0
        %539 = vmatprep.subr.mxu0 0.0
        %540 = vmatpush1.msra.mxu0 0.0
        %541 = vmatprep.subr.mxu0 0.0
        %542 = vmatpush1.msra.mxu0 0.0
        %543 = vmatprep.subr.mxu0 0.0
        %544 = vmatpush1.msra.mxu0 0.0
        %545 = vmatprep.subr.mxu0 0.0
        %546 = vmatpush1.msra.mxu0 0.0
        %547 = vmatprep.subr.mxu0 0.0
        %548 = vmatpush1.msra.mxu0 0.0
        %549 = vmatprep.subr.mxu0 0.0
        %550 = vmatpush1.msra.mxu0 0.0
        %551 = vmatprep.subr.mxu0 0.0
        %552 = vmatpush1.msra.mxu0 0.0
        %553 = vmatprep.subr.mxu0 0.0
        %554 = vmatpush1.msra.mxu0 0.0
        %555 = vmatprep.subr.mxu0 0.0
        %556 = vmatpush1.msra.mxu0 0.0
        %557 = vmatprep.subr.mxu0 0.0
        %558 = vmatpush1.msra.mxu0 0.0
        %559 = vmatprep.subr.mxu0 0.0
        %560 = vmatpush1.msra.mxu0 0.0
        %561 = vmatprep.subr.mxu0 0.0
        %562 = vmatpush1.msra.mxu0 0.0
        %563 = vmatprep.subr.mxu0 0.0
        %564 = vmatpush1.msra.mxu0 0.0
        %565 = vmatprep.subr.mxu0 0.0
        %566 = vmatpush1.msra.mxu0 0.0
        %567 = vmatprep.subr.mxu0 0.0
        %568 = vmatpush1.msra.mxu0 0.0
        %569 = vmatprep.subr.mxu0 0.0
        %570 = vmatpush1.msra.mxu0 0.0
        %571 = vmatprep.subr.mxu0 0.0
        %572 = vmatpush1.msra.mxu0 0.0
        %573 = vmatprep.subr.mxu0 0.0
        %574 = vmatpush1.msra.mxu0 0.0
        %575 = vmatprep.subr.mxu0 0.0
        %576 = vmatpush1.msra.mxu0 0.0
        %577 = vmatprep.subr.mxu0 0.0
        %578 = vmatpush1.msra.mxu0 0.0
        %579 = vmatprep.subr.mxu0 0.0
        %580 = vmatpush1.msra.mxu0 0.0
        %581 = vmatprep.subr.mxu0 0.0
        %582 = vmatpush1.msra.mxu0 0.0
        %583 = vmatprep.subr.mxu0 0.0
        %584 = vmatpush1.msra.mxu0 0.0
        %585 = vmatprep.subr.mxu0 0.0
        %586 = vmatpush1.msra.mxu0 0.0
        %587 = vmatprep.subr.mxu0 0.0
        %588 = vmatpush1.msra.mxu0 0.0
        %589 = vmatprep.subr.mxu0 0.0
        %590 = vmatpush1.msra.mxu0 0.0
        %591 = vmatprep.subr.mxu0 0.0
        %592 = vmatpush1.msra.mxu0 0.0
        %593 = vmatprep.mubr.f32.mxu0 0.0
        %594 = vmatmul.mubr.f32.gmra.mrb[0].mxu0 %v527
        %v595 = vpop.f32.mrb[0].mxu0
        %v596 = vadd.f32 %v521, %v595
        %v597 = vpop.f32.mrb[0].mxu0
        %v598 = vadd.f32 %v523, %v597
        %599 = vdwg.mxu0
        %v600 = vld [vmem:[%s6] sm:$0xff]
        %602 = vset.pattern.permute.xlu0 0
        %603 = vperm.xlu0 %602, %v600
        %v604 = vpop.permute.xlu0 %603
        %v606 = vadd.f32 %v596, %v604
        %v607 = vadd.f32 %v598, %v604
        %v608 = vtanh.pop %v606
        %v609 = vtanh.pop %v607
        %v610 = vld [vmem:[%s7] sm:$0xff]
        %v611 = vld [vmem:[%s7 + $0x8] sm:$0xff]
        %v612 = vld [vmem:[%s7 + $0x10] sm:$0xff]
        %v613 = vld [vmem:[%s7 + $0x18] sm:$0xff]
        %v614 = vld [vmem:[%s8] sm:$0xff]
        %v615 = vld [vmem:[%s8 + $0x8] sm:$0xff]
        %v616 = vld [vmem:[%s8 + $0x10] sm:$0xff]
        %v617 = vld [vmem:[%s8 + $0x18] sm:$0xff]
        %619 = vset.pattern.permute.xlu0 0
        %620 = vperm.xlu0 %619, %v614
        %v621 = vpop.permute.xlu0 %620
        %624 = vset.pattern.permute.xlu0 0
        %625 = vperm.xlu0 %624, %v615
        %v626 = vpop.permute.xlu0 %625
        %629 = vset.pattern.permute.xlu0 0
        %630 = vperm.xlu0 %629, %v616
        %v631 = vpop.permute.xlu0 %630
        %634 = vset.pattern.permute.xlu0 0
        %635 = vperm.xlu0 %634, %v617
        %v636 = vpop.permute.xlu0 %635
        %vm638 = vcmask 64512
        %v640 = vsel %vm638, %v610, 0
        %v643 = vsel %vm638, %v611, 0
        %v646 = vsel %vm638, %v612, 0
        %v649 = vsel %vm638, %v613, 0
        %651 = vmatprep.subr.mxu0 %v609
        %652 = vmatpush1.msra.mxu0 %v608
        %653 = vmatprep.subr.mxu0 0.0
        %654 = vmatpush1.msra.mxu0 0.0
        %655 = vmatprep.subr.mxu0 0.0
        %656 = vmatpush1.msra.mxu0 0.0
        %657 = vmatprep.subr.mxu0 0.0
        %658 = vmatpush1.msra.mxu0 0.0
        %659 = vmatprep.subr.mxu0 0.0
        %660 = vmatpush1.msra.mxu0 0.0
        %661 = vmatprep.subr.mxu0 0.0
        %662 = vmatpush1.msra.mxu0 0.0
        %663 = vmatprep.subr.mxu0 0.0
        %664 = vmatpush1.msra.mxu0 0.0
        %665 = vmatprep.subr.mxu0 0.0
        %666 = vmatpush1.msra.mxu0 0.0
        %667 = vmatprep.subr.mxu0 0.0
        %668 = vmatpush1.msra.mxu0 0.0
        %669 = vmatprep.subr.mxu0 0.0
        %670 = vmatpush1.msra.mxu0 0.0
        %671 = vmatprep.subr.mxu0 0.0
        %672 = vmatpush1.msra.mxu0 0.0
        %673 = vmatprep.subr.mxu0 0.0
        %674 = vmatpush1.msra.mxu0 0.0
        %675 = vmatprep.subr.mxu0 0.0
        %676 = vmatpush1.msra.mxu0 0.0
        %677 = vmatprep.subr.mxu0 0.0
        %678 = vmatpush1.msra.mxu0 0.0
        %679 = vmatprep.subr.mxu0 0.0
        %680 = vmatpush1.msra.mxu0 0.0
        %681 = vmatprep.subr.mxu0 0.0
        %682 = vmatpush1.msra.mxu0 0.0
        %683 = vmatprep.subr.mxu0 0.0
        %684 = vmatpush1.msra.mxu0 0.0
        %685 = vmatprep.subr.mxu0 0.0
        %686 = vmatpush1.msra.mxu0 0.0
        %687 = vmatprep.subr.mxu0 0.0
        %688 = vmatpush1.msra.mxu0 0.0
        %689 = vmatprep.subr.mxu0 0.0
        %690 = vmatpush1.msra.mxu0 0.0
        %691 = vmatprep.subr.mxu0 0.0
        %692 = vmatpush1.msra.mxu0 0.0
        %693 = vmatprep.subr.mxu0 0.0
        %694 = vmatpush1.msra.mxu0 0.0
        %695 = vmatprep.subr.mxu0 0.0
        %696 = vmatpush1.msra.mxu0 0.0
        %697 = vmatprep.subr.mxu0 0.0
        %698 = vmatpush1.msra.mxu0 0.0
        %699 = vmatprep.subr.mxu0 0.0
        %700 = vmatpush1.msra.mxu0 0.0
        %701 = vmatprep.subr.mxu0 0.0
        %702 = vmatpush1.msra.mxu0 0.0
        %703 = vmatprep.subr.mxu0 0.0
        %704 = vmatpush1.msra.mxu0 0.0
        %705 = vmatprep.subr.mxu0 0.0
        %706 = vmatpush1.msra.mxu0 0.0
        %707 = vmatprep.subr.mxu0 0.0
        %708 = vmatpush1.msra.mxu0 0.0
        %709 = vmatprep.subr.mxu0 0.0
        %710 = vmatpush1.msra.mxu0 0.0
        %711 = vmatprep.subr.mxu0 0.0
        %712 = vmatpush1.msra.mxu0 0.0
        %713 = vmatprep.subr.mxu0 0.0
        %714 = vmatpush1.msra.mxu0 0.0
        %715 = vmatprep.mubr.f32.mxu0 0.0
        %716 = vmatmul.mubr.f32.gmra.mrb[0].mxu0 %v640
        %v717 = vpop.f32.mrb[0].mxu0
        %v718 = vadd.f32 %v621, %v717
        %v719 = vpop.f32.mrb[0].mxu0
        %v720 = vadd.f32 %v621, %v719
        %721 = vmatprep.mubr.f32.mxu0 0.0
        %722 = vmatmul.mubr.f32.gmra.mrb[0].mxu0 %v643
        %v723 = vpop.f32.mrb[0].mxu0
        %v724 = vadd.f32 %v626, %v723
        %v725 = vpop.f32.mrb[0].mxu0
        %v726 = vadd.f32 %v626, %v725
        %727 = vmatprep.mubr.f32.mxu0 0.0
        %728 = vmatmul.mubr.f32.gmra.mrb[0].mxu0 %v646
        %v729 = vpop.f32.mrb[0].mxu0
        %v730 = vadd.f32 %v631, %v729
        %v731 = vpop.f32.mrb[0].mxu0
        %v732 = vadd.f32 %v631, %v731
        %733 = vmatprep.mubr.f32.mxu0 0.0
        %734 = vmatmul.mubr.f32.gmra.mrb[0].mxu0 %v649
        %v735 = vpop.f32.mrb[0].mxu0
        %v736 = vadd.f32 %v636, %v735
        %v737 = vpop.f32.mrb[0].mxu0
        %v738 = vadd.f32 %v636, %v737
        %739 = vdwg.mxu0
        %v740 = vxor.u32 %v718, 2147483648
        %v741 = vxor.u32 %v720, 2147483648
        %v742 = vxor.u32 %v724, 2147483648
        %v743 = vxor.u32 %v726, 2147483648
        %v744 = vxor.u32 %v730, 2147483648
        %v745 = vxor.u32 %v732, 2147483648
        %v746 = vxor.u32 %v736, 2147483648
        %v747 = vxor.u32 %v738, 2147483648
        %v748 = vmul.f32 %v740, 1.442695
        %v749 = vpow.pop %v748
        %v750 = vmul.f32 %v741, 1.442695
        %v751 = vpow.pop %v750
        %v752 = vmul.f32 %v742, 1.442695
        %v753 = vpow.pop %v752
        %v754 = vmul.f32 %v743, 1.442695
        %v755 = vpow.pop %v754
        %v756 = vmul.f32 %v744, 1.442695
        %v757 = vpow.pop %v756
        %v758 = vmul.f32 %v745, 1.442695
        %v759 = vpow.pop %v758
        %v760 = vmul.f32 %v746, 1.442695
        %v761 = vpow.pop %v760
        %v762 = vmul.f32 %v747, 1.442695
        %v763 = vpow.pop %v762
        %v764 = vadd.f32 %v749, 1.0
        %v765 = vadd.f32 %v751, 1.0
        %v766 = vadd.f32 %v753, 1.0
        %v767 = vadd.f32 %v755, 1.0
        %v768 = vadd.f32 %v757, 1.0
        %v769 = vadd.f32 %v759, 1.0
        %v770 = vadd.f32 %v761, 1.0
        %v771 = vadd.f32 %v763, 1.0
        %v772 = vrcp.pop %v764
        %v773 = vmul.f32 1.0, %v772
        %v774 = vrcp.pop %v765
        %v775 = vmul.f32 1.0, %v774
        %v776 = vrcp.pop %v766
        %v777 = vmul.f32 1.0, %v776
        %v778 = vrcp.pop %v767
        %v779 = vmul.f32 1.0, %v778
        %v780 = vrcp.pop %v768
        %v781 = vmul.f32 1.0, %v780
        %v782 = vrcp.pop %v769
        %v783 = vmul.f32 1.0, %v782
        %v784 = vrcp.pop %v770
        %v785 = vmul.f32 1.0, %v784
        %v786 = vrcp.pop %v771
        %v787 = vmul.f32 1.0, %v786
        %788 = vst [vmem:[%s396] sm:$0xff] %v773
        %789 = vst [vmem:[%s396 + $0x8] sm:$0xff] %v775
        %790 = vst [vmem:[%s396 + $0x10] sm:$0xff] %v777
        %791 = vst [vmem:[%s396 + $0x18] sm:$0xff] %v779
        %792 = vst [vmem:[%s396 + $0x20] sm:$0xff] %v781
        %793 = vst [vmem:[%s396 + $0x28] sm:$0xff] %v783
        %794 = vst [vmem:[%s396 + $0x30] sm:$0xff] %v785
        %795 = vst [vmem:[%s396 + $0x38] sm:$0xff] %v787
        %s796 = sand.u32 %s233, 1
        %s797 = scalar_lea.sflag [#allocation5], %s796
        %s798 = sand.u32 %s233, 1
        %s799 = smul.addr %s798, 64
        %s800 = scalar_lea.vmem [#allocation6], %s799
        // Predicated region
        $region84: #{tpu_custom_call.1} parent=74 // pred_check
          %p801 = pneg %p243
        $region85: #{tpu_custom_call.1} parent=74 // pred_check_branch
          %803 = sbr.rel (%p801) target = $region87
        $region86: #{tpu_custom_call.1} parent=74 // pred_region
          %s804 = smul.u32 2, %s26
          %s806 = ssub.s32 1024, 1024
          %807 = vsyncadd %s797, %s806
          %s808 = smul.addr %s804, 128
          %s809 = scalar_lea.hbm %s9, %s808
          %s810 = sshll.u32 %s800, 4
          %s811 = int_to_ptr.vmem [resolvable:$true] %s810
          %816 = dma.vmem_to_hbm [thread:$0]  %s811, 1024, %s809, %s797, 256, 512, 16
        $region87: #{tpu_custom_call.1} parent=74 // pred_fallthru
          _
      $region75: #{tpu_custom_call.1} parent=5 // pred_fallthru
        _
      %p817 = scmp.le.s32.totalorder 2, %s21
      // Predicated region
      $region88: #{tpu_custom_call.1} parent=5 // pred_check
        %p818 = pneg %p817
      $region89: #{tpu_custom_call.1} parent=5 // pred_check_branch
        %820 = sbr.rel (%p818) target = $region91
      $region90: #{tpu_custom_call.1} parent=5 // pred_region
        %s821 = ssub.s32 %s21, 2
        // Predicated region
        $region92: #{tpu_custom_call.1} parent=90 // pred_check
          %p822 = pneg %p249
        $region93: #{tpu_custom_call.1} parent=90 // pred_check_branch
          %824 = sbr.rel (%p822) target = $region95
        $region94: #{tpu_custom_call.1} parent=90 // pred_region
          %s825 = sand.u32 %s234, 1
          %s826 = scalar_lea.sflag [#allocation5], %s825
          %s827 = sand.u32 %s234, 1
          %s828 = smul.addr %s827, 64
          %s829 = scalar_lea.vmem [#allocation6], %s828
          %830 = dma.done %s826, 1024
        $region95: #{tpu_custom_call.1} parent=90 // pred_fallthru
          _
      $region91: #{tpu_custom_call.1} parent=5 // pred_fallthru
        _
    $region6: #{tpu_custom_call.1} parent=1 // loop_footer
      %s25 = sadd.s32 1, %s21
    $region7: #{tpu_custom_call.1} parent=1 // loop_footer_branch
      %20 = sbr.rel target = $region3
    $region8: #{tpu_custom_call.1} parent=1 // loop_exit
      _
    %831 = vsyncpa [#allocation4], 1
    %s832 = scalar_lea.sflag [#allocation4], 1
    %833 = vsyncpa %s832, 1
    %834 = vsyncpa [#allocation5], 1
    %s835 = scalar_lea.sflag [#allocation5], 1
    %836 = vsyncpa %s835, 1

</llo_original>
